<compile_context>
chip_gen: v7x
topology: tpu7x:2x2x1
jax: 0.10.0
libtpu: 0.0.40
codegen_flags: <defaults>
</compile_context>

<pallas_src>
import functools

import jax
import jax.numpy as jnp
from jax.experimental import pallas as pl
from jax.experimental.pallas import tpu as pltpu


def _sublane_multiple(dtype) -> int:
    size = jnp.dtype(dtype).itemsize
    if size >= 4:
        return 8
    if size == 2:
        return 16
    return 32


def _round_up(x: int, m: int) -> int:
    return ((x + m - 1) // m) * m


def _vmem_capacity_bytes() -> int:
    try:
        return int(pltpu.get_tpu_info().vmem_capacity_bytes)
    except Exception:
        return 64 << 20  # conservative fallback (v7x-sized)


def _default_mxu_reduce() -> bool:
    # Only v7x benefits (2-slot XLU + 3.2 TB/s HBM); v5e/v6e stay HBM-bound
    # and the extra matmuls would just add vector-extended-slot pressure.
    try:
        kind = jax.devices()[0].device_kind.lower()
    except Exception:
        return False
    return ("v7" in kind) or ("7x" in kind)


def _ce_partial_kernel(logits_ref, tgt_ref, out_ref, *, blk_n, n_rows,
                       tiles_per_split, mxu_reduce):
    s = pl.program_id(0)   # split ("core") index        -- parallel axis
    j = pl.program_id(1)   # row-tile index within split -- arbitrary (accum)

    @pl.when(j == 0)
    def _init():
        out_ref[...] = jnp.zeros_like(out_ref)

    x = logits_ref[...].astype(jnp.float32)               # (blk_n, C) f32
    tgt = tgt_ref[...]                                     # (blk_n, 1) int32

    # Fused numerically-stable log-softmax + target gather.  The row max m
    # cancels: ce = log(sum(exp(x - m))) - sum(mask * (x - m)).
    m = jnp.max(x, axis=-1, keepdims=True)                 # (blk_n, 1)  XLU
    xs = x - m
    classes = jax.lax.broadcasted_iota(jnp.int32, x.shape, 1)
    masked = jnp.where(classes == tgt, xs, 0.0)            # one value / row
    e = jnp.exp(xs)                                        # EUP

    if mxu_reduce:
        # Offload the two lane-dimension sums to the (otherwise idle) MXU:
        # (blk_n, C) @ (C, 128)-of-ones -> every column holds the row sum.
        ones = jnp.ones((x.shape[-1], 128), jnp.float32)
        sum_e = jnp.dot(e, ones, preferred_element_type=jnp.float32)[:, :1]
        tgt_s = jnp.dot(masked, ones, preferred_element_type=jnp.float32)[:, :1]
    else:
        sum_e = jnp.sum(e, axis=-1, keepdims=True)          # XLU
        tgt_s = jnp.sum(masked, axis=-1, keepdims=True)     # XLU
    ce = jnp.log(sum_e) - tgt_s                              # (blk_n, 1)

    # Mask rows beyond the true batch.  Covers both the padded partial last
    # tile and the phantom tile of an odd-tile-count 2-way split (its block
    # index is clamped in the index_map, so it re-reads valid data that is
    # then zeroed here).  Select (not multiply) keeps inf/NaN out of the sum.
    tile = s * tiles_per_split + j
    rows = tile * blk_n + jax.lax.broadcasted_iota(jnp.int32, (blk_n, 1), 0)
    ce = jnp.where(rows < n_rows, ce, 0.0)

    # Accumulate this tile's CE sum into the resident per-split block.
    out_ref[...] += jnp.sum(ce)


def focal_loss(logits, targets, gamma=0.0, *, blk_n=None, mxu_reduce=None,
               interpret=False):
    """logits: (N, C) float (any float dtype), targets: (N,) int class indices.

    Returns scalar f32 focal loss with the same semantics as the PyTorch
    module (CrossEntropyLoss(mean) -> (1 - exp(-logp))**gamma * logp).
    """
    n, c = logits.shape
    itemsize = jnp.dtype(logits.dtype).itemsize
    sub = _sublane_multiple(logits.dtype)

    if mxu_reduce is None:
        mxu_reduce = _default_mxu_reduce()

    # --- VMEM budgeting ----------------------------------------------------
    vmem_cap = _vmem_capacity_bytes()
    budget = int(0.70 * vmem_cap) - (2 << 20)   # headroom for compiler scratch
    mxu_ones_bytes = c * 128 * 4 if mxu_reduce else 0
    if mxu_reduce and mxu_ones_bytes > budget // 4:
        mxu_reduce = False                      # huge C: ones tile not worth it
        mxu_ones_bytes = 0
    budget -= mxu_ones_bytes

    # Per tile row: 2x native input (double-buffered DMA), ~2x f32
    # intermediates (upcast/xs + exp-or-masked), 2x int32 target.
    per_row_bytes = c * (2 * itemsize + 2 * 4) + 2 * 4
    max_rows = max(sub, (budget // max(1, per_row_bytes)) // sub * sub)

    if blk_n is None:
        blk_n = max_rows
    else:
        blk_n = min(_round_up(int(blk_n), sub), max_rows)
    blk_n = int(max(sub, min(blk_n, _round_up(n, sub))))

    n_tiles = pl.cdiv(n, blk_n)
    # 2-way split over a leading "parallel" axis whenever there is >1 tile so
    # both v7x TensorCores get work (1-TC v5e/v6e just loops it).
    n_split = 2 if n_tiles >= 2 else 1
    tiles_per_split = pl.cdiv(n_tiles, n_split)
    # TODO(synk): if a bundle dump shows plain "parallel" is not sharded across
    # v7x cores, switch the leading axis to pltpu.CORE_PARALLEL.

    tgt = targets.astype(jnp.int32).reshape(n, 1)

    vmem_needed = (2 * blk_n * c * itemsize     # double-buffered input tiles
                   + 2 * blk_n * c * 4          # in-kernel f32 working set
                   + 2 * blk_n * 4              # double-buffered target tiles
                   + 2 * 8 * 128 * 4            # resident accumulator blocks
                   + mxu_ones_bytes)
    vmem_limit = int(min(int(0.90 * vmem_cap),
                         max(vmem_needed + (8 << 20), 16 << 20)))

    last_tile = max(n_tiles - 1, 0)

    def row_tile_map(s, j):
        # Clamp the phantom last tile of an odd split; its rows are masked
        # to zero inside the kernel.
        return (jnp.minimum(s * tiles_per_split + j, last_tile), 0)

    kernel = functools.partial(_ce_partial_kernel, blk_n=blk_n, n_rows=n,
                               tiles_per_split=tiles_per_split,
                               mxu_reduce=mxu_reduce)

    cost = pl.CostEstimate(
        flops=int(6 * n * c),
        transcendentals=int(n * c),
        bytes_accessed=int(n * c * itemsize + n * 4 + n_split * 8 * 128 * 4),
    )

    partials = pl.pallas_call(
        kernel,
        # (n_split, 8, 128): each per-split accumulator is a full lane-aligned
        # (8, 128) tile; only [s, 0, 0] is consumed by the epilogue.
        out_shape=jax.ShapeDtypeStruct((n_split, 8, 128), jnp.float32),
        grid=(n_split, tiles_per_split),
        in_specs=[
            pl.BlockSpec((blk_n, c), row_tile_map),
            pl.BlockSpec((blk_n, 1), row_tile_map),
        ],
        out_specs=pl.BlockSpec((1, 8, 128), lambda s, j: (s, 0, 0)),
        compiler_params=pltpu.CompilerParams(
            dimension_semantics=("parallel", "arbitrary"),
            vmem_limit_bytes=vmem_limit,
        ),
        cost_estimate=cost,
        interpret=interpret,
    )(logits, tgt)

    # Tiny scalar epilogue in JAX glue: mean CE -> focal modulation.
    ce_sum = jnp.sum(partials[:, 0, 0])
    logp = ce_sum / jnp.float32(n)          # CrossEntropyLoss(mean)
    p = jnp.exp(-logp)
    # Clamp so (1 - p) ** gamma never sees a tiny negative base (NaN guard);
    # matches torch.pow(0, gamma > 0) = 0 and pow(x, 0) = 1.
    return jnp.maximum(1.0 - p, 0.0) ** gamma * logp


if __name__ == "__main__":
    key = jax.random.PRNGKey(0)
    k1, k2, k3, k4, k5, k6 = jax.random.split(key, 6)
    gamma = 2.0

    def ref_focal(logits, targets, g):
        x = logits.astype(jnp.float32)
        lp = jax.nn.log_softmax(x, axis=-1)
        ce = -jnp.take_along_axis(lp, targets[:, None], axis=-1)[:, 0]
        logp = jnp.mean(ce)
        return (1.0 - jnp.exp(-logp)) ** g * logp

    # Case 1: small f32 classification head (single tile, single split,
    # per-generation auto MXU gating).
    N1, C1 = 8, 32
    logits1 = jax.random.normal(k1, (N1, C1), dtype=jnp.float32)
    targets1 = jax.random.randint(k2, (N1,), 0, C1, dtype=jnp.int32)
    loss1 = focal_loss(logits1, targets1, gamma=gamma)

    # Case 2: bf16 logits (native-dtype streaming, blk_n already a multiple of
    # the bf16 sublane pack of 16), even tile count with the 2-way core split
    # and a padded partial last tile (60 rows, blk_n=16 -> 4 tiles).
    N2, C2 = 60, 160
    logits2 = jax.random.normal(k3, (N2, C2), dtype=jnp.float32).astype(jnp.bfloat16)
    targets2 = jax.random.randint(k4, (N2,), 0, C2, dtype=jnp.int32)
    loss2 = focal_loss(logits2, targets2, gamma=gamma, blk_n=16)

    # Case 3: odd tile count (40 rows / blk_n=16 -> 3 tiles -> one phantom
    # tile on split 1) with the MXU lane-reduction path forced on.
    N3, C3 = 40, 96
    logits3 = jax.random.normal(k5, (N3, C3), dtype=jnp.float32)
    targets3 = jax.random.randint(k6, (N3,), 0, C3, dtype=jnp.int32)
    loss3 = focal_loss(logits3, targets3, gamma=gamma, blk_n=16, mxu_reduce=True)

    jax.block_until_ready((loss1, loss2, loss3))

    r1 = ref_focal(logits1, targets1, gamma)
    r2 = ref_focal(logits2, targets2, gamma)
    r3 = ref_focal(logits3, targets3, gamma)
    assert jnp.allclose(loss1, r1, rtol=1e-5, atol=1e-6), (loss1, r1)
    assert jnp.allclose(loss2, r2, rtol=1e-4, atol=1e-5), (loss2, r2)
    assert jnp.allclose(loss3, r3, rtol=1e-5, atol=1e-6), (loss3, r3)

    print("KERNEL_OK")
</pallas_src>

<mosaic_0001>
module attributes {stable_mosaic.version = 11 : i64} {
  func.func @_ce_partial_kernel(%arg0: i32, %arg1: i32, %arg2: memref<8x32xf32, #tpu.memory_space<vmem>>, %arg3: memref<8x1xi32, #tpu.memory_space<vmem>>, %arg4: memref<1x8x128xf32, #tpu.memory_space<vmem>>) attributes {dimension_semantics = [#tpu.dimension_semantics<parallel>, #tpu.dimension_semantics<arbitrary>], iteration_bounds = array<i64: 1, 1>, scalar_prefetch = 0 : i64, scratch_operands = 0 : i64, tpu.core_type = #tpu.core_type<tc>, window_params = [{transform_indices = @transform_0, window_bounds = array<i64: 8, 32>}, {transform_indices = @transform_1, window_bounds = array<i64: 8, 1>}, {transform_indices = @transform_2, window_bounds = array<i64: 1, 8, 128>}]} {
    %c0_i32 = arith.constant 0 : i32
    %0 = arith.cmpi eq, %arg1, %c0_i32 : i32
    %1 = arith.extui %0 : i1 to i32
    %c0_i32_0 = arith.constant 0 : i32
    %2 = arith.cmpi ne, %1, %c0_i32_0 : i32
    scf.if %2 {
      %cst_16 = arith.constant 0.000000e+00 : f32
      %39 = vector.broadcast %cst_16 : f32 to vector<1x8x128xf32>
      %c0_17 = arith.constant 0 : index
      %c0_18 = arith.constant 0 : index
      %c0_19 = arith.constant 0 : index
      %40 = vector.load %arg4[%c0_17, %c0_18, %c0_19] : memref<1x8x128xf32, #tpu.memory_space<vmem>>, vector<1x8x128xf32>
      tpu.vector_store %arg4[%c0_17, %c0_18, %c0_19], %39 {strides = array<i32>} : memref<1x8x128xf32, #tpu.memory_space<vmem>>, vector<1x8x128xf32>,
    } else {
    }
    %c0 = arith.constant 0 : index
    %c0_1 = arith.constant 0 : index
    %3 = vector.load %arg2[%c0, %c0_1] : memref<8x32xf32, #tpu.memory_space<vmem>>, vector<8x32xf32>
    %c0_2 = arith.constant 0 : index
    %c0_3 = arith.constant 0 : index
    %4 = vector.load %arg3[%c0_2, %c0_3] : memref<8x1xi32, #tpu.memory_space<vmem>>, vector<8x1xi32>
    %cst = arith.constant dense<0xFF800000> : vector<8xf32>
    %5 = vector.multi_reduction <maximumf>, %3, %cst [1] : vector<8x32xf32> to vector<8xf32>
    %6 = vector.shape_cast %5 : vector<8xf32> to vector<8x1xf32>
    %7 = vector.broadcast %6 : vector<8x1xf32> to vector<8x32xf32>
    %8 = arith.subf %3, %7 : vector<8x32xf32>
    %9 = tpu.iota {dimensions = array<i32: 1>} : vector<8x32xi32>
    %10 = vector.broadcast %4 : vector<8x1xi32> to vector<8x32xi32>
    %11 = arith.cmpi eq, %9, %10 : vector<8x32xi32>
    %cst_4 = arith.constant 0.000000e+00 : f32
    %12 = vector.broadcast %cst_4 : f32 to vector<8x32xf32>
    %13 = arith.select %11, %8, %12 : vector<8x32xi1>, vector<8x32xf32>
    %14 = math.exp %8 : vector<8x32xf32>
    %cst_5 = arith.constant dense<0.000000e+00> : vector<8xf32>
    %15 = vector.multi_reduction <add>, %14, %cst_5 [1] : vector<8x32xf32> to vector<8xf32>
    %16 = vector.shape_cast %15 : vector<8xf32> to vector<8x1xf32>
    %cst_6 = arith.constant dense<0.000000e+00> : vector<8xf32>
    %17 = vector.multi_reduction <add>, %13, %cst_6 [1] : vector<8x32xf32> to vector<8xf32>
    %18 = vector.shape_cast %17 : vector<8xf32> to vector<8x1xf32>
    %19 = math.log %16 : vector<8x1xf32>
    %20 = arith.subf %19, %18 : vector<8x1xf32>
    %c1_i32 = arith.constant 1 : i32
    %21 = arith.muli %arg0, %c1_i32 : i32
    %22 = arith.addi %21, %arg1 : i32
    %c8_i32 = arith.constant 8 : i32
    %23 = arith.muli %22, %c8_i32 : i32
    %24 = tpu.iota {dimensions = array<i32: 0>} : vector<8x1xi32>
    %25 = vector.broadcast %23 : i32 to vector<8x1xi32>
    %26 = arith.addi %25, %24 : vector<8x1xi32>
    %c8_i32_7 = arith.constant 8 : i32
    %27 = vector.broadcast %c8_i32_7 : i32 to vector<8x1xi32>
    %28 = arith.cmpi slt, %26, %27 : vector<8x1xi32>
    %cst_8 = arith.constant 0.000000e+00 : f32
    %29 = vector.broadcast %cst_8 : f32 to vector<8x1xf32>
    %30 = arith.select %28, %20, %29 : vector<8x1xi1>, vector<8x1xf32>
    %c0_9 = arith.constant 0 : index
    %c0_10 = arith.constant 0 : index
    %c0_11 = arith.constant 0 : index
    %31 = vector.load %arg4[%c0_9, %c0_10, %c0_11] : memref<1x8x128xf32, #tpu.memory_space<vmem>>, vector<1x8x128xf32>
    %32 = vector.shape_cast %30 : vector<8x1xf32> to vector<1x8x1xf32>
    %cst_12 = arith.constant dense<0.000000e+00> : vector<1xf32>
    %33 = vector.multi_reduction <add>, %32, %cst_12 [1, 2] : vector<1x8x1xf32> to vector<1xf32>
    %34 = vector.shape_cast %33 : vector<1xf32> to vector<1x1x1xf32>
    %35 = vector.extract %34[0, 0, 0] : f32 from vector<1x1x1xf32>
    %36 = vector.broadcast %35 : f32 to vector<1x8x128xf32>
    %37 = arith.addf %31, %36 : vector<1x8x128xf32>
    %c0_13 = arith.constant 0 : index
    %c0_14 = arith.constant 0 : index
    %c0_15 = arith.constant 0 : index
    %38 = vector.load %arg4[%c0_13, %c0_14, %c0_15] : memref<1x8x128xf32, #tpu.memory_space<vmem>>, vector<1x8x128xf32>
    tpu.vector_store %arg4[%c0_13, %c0_14, %c0_15], %37 {strides = array<i32>} : memref<1x8x128xf32, #tpu.memory_space<vmem>>, vector<1x8x128xf32>,
    return
  }
  func.func @transform_0(%arg0: i32, %arg1: i32) -> (i32, i32) {
    %c1_i32 = arith.constant 1 : i32
    %0 = arith.muli %arg0, %c1_i32 : i32
    %1 = arith.addi %0, %arg1 : i32
    %c0_i32 = arith.constant 0 : i32
    %2 = arith.minsi %1, %c0_i32 : i32
    %c0_i32_0 = arith.constant 0 : i32
    %c0_i32_1 = arith.constant 0 : i32
    return %2, %c0_i32_0 : i32, i32
  }
  func.func @transform_1(%arg0: i32, %arg1: i32) -> (i32, i32) {
    %c1_i32 = arith.constant 1 : i32
    %0 = arith.muli %arg0, %c1_i32 : i32
    %1 = arith.addi %0, %arg1 : i32
    %c0_i32 = arith.constant 0 : i32
    %2 = arith.minsi %1, %c0_i32 : i32
    %c0_i32_0 = arith.constant 0 : i32
    %c0_i32_1 = arith.constant 0 : i32
    return %2, %c0_i32_0 : i32, i32
  }
  func.func @transform_2(%arg0: i32, %arg1: i32) -> (i32, i32, i32) {
    %c0_i32 = arith.constant 0 : i32
    %c0_i32_0 = arith.constant 0 : i32
    %c0_i32_1 = arith.constant 0 : i32
    return %arg0, %c0_i32, %c0_i32_0 : i32, i32, i32
  }
}

</mosaic_0001>

<llo_original>
// kernel: tpu_custom_call.1
$region0: #{tpu_custom_call.1}
  #allocation0 [shape = 'u32[]', space=smem, size = 0x4, offset = 0x4, fixed_abs, tag = 'smem constant byte address 0x4 - core index']
  #allocation1 [shape = 'u32[144,128]{1,0:T(1,128)}', space=vmem, size = 0x12000, scoped, tag = 'internal scratch']
  %s0 = inlined_call_operand.vmem [shape: f32[8,32], index: 0, kind: input, shape index: {}]
  %s1 = inlined_call_operand.vmem [shape: s32[8,1], index: 1, kind: input, shape index: {}]
  %s2 = inlined_call_operand.hbm [shape: f32[1,8,128], index: 2, kind: output, shape index: {}]
  %s3 = sld [smem:[#allocation0]]
  $region22: #{tpu_custom_call.1} parent=0
    _
  %s5 = ssub.s32 1, %s3
  %s6 = scalar_select 0, %s5, %s3
  $region1: #{tpu_custom_call.1} parent=0
    #allocation2 [shape = 'u8[4096]{0}', space=vmem, size = 0x1000, scoped, tag = 'output window, operand 0, single buffered']
    #allocation3 [shape = 's32[1]{0}', space=sflag, size = 0x4, scoped, tag = 'scoped memory for tpu_custom_call.1']
    %7 = vsyncpa [#allocation3], 0
    // Predicated region
    $region2: #{tpu_custom_call.1} parent=1 // pred_check
      _
    $region3: #{tpu_custom_call.1} parent=1 // pred_check_branch
      %9 = sbr.rel (0) target = $region5
    $region4: #{tpu_custom_call.1} parent=1 // pred_region
      %s10 = sadd.s32 0, 0
      %p11 = scmp.lt.s32.totalorder %s10, 0
      %s12 = scalar_select %p11, %s10, 0
      %p13 = scmp.lt.s32.totalorder %s12, 0
      %s14 = scalar_select %p13, %s12, 0
      %s15 = smul.addr %s14, 8
      %s16 = scalar_lea.vmem %s0, %s15
      %s17 = sadd.s32 0, 0
      %p18 = scmp.lt.s32.totalorder %s17, 0
      %s19 = scalar_select %p18, %s17, 0
    $region5: #{tpu_custom_call.1} parent=1 // pred_fallthru
      _
    // Predicated region
    $region6: #{tpu_custom_call.1} parent=1 // pred_check
      _
    $region7: #{tpu_custom_call.1} parent=1 // pred_check_branch
      %21 = sbr.rel (0) target = $region9
    $region8: #{tpu_custom_call.1} parent=1 // pred_region
      %s22 = sadd.s32 0, 0
      %p23 = scmp.lt.s32.totalorder %s22, 0
      %s24 = scalar_select %p23, %s22, 0
      %p25 = scmp.lt.s32.totalorder %s24, 0
      %s26 = scalar_select %p25, %s24, 0
      %s27 = smul.addr %s26, 8
      %s28 = scalar_lea.vmem %s1, %s27
      %s29 = sadd.s32 0, 0
      %p30 = scmp.lt.s32.totalorder %s29, 0
      %s31 = scalar_select %p30, %s29, 0
    $region9: #{tpu_custom_call.1} parent=1 // pred_fallthru
      _
    %s32 = sadd.s32 0, 0
    %p33 = scmp.lt.s32.totalorder %s32, 0
    %s34 = scalar_select %p33, %s32, 0
    %p35 = scmp.lt.s32.totalorder %s34, 0
    %s36 = scalar_select %p35, %s34, 0
    %s37 = smul.addr %s36, 8
    %s38 = scalar_lea.vmem %s0, %s37
    %s39 = sadd.s32 0, 0
    %p40 = scmp.lt.s32.totalorder %s39, 0
    %s41 = scalar_select %p40, %s39, 0
    %p42 = scmp.lt.s32.totalorder %s41, 0
    %s43 = scalar_select %p42, %s41, 0
    %s44 = smul.addr %s43, 8
    %s45 = scalar_lea.vmem %s1, %s44
    %s46 = sadd.s32 0, 0
    %p47 = scmp.lt.s32.totalorder %s46, 0
    %s48 = scalar_select %p47, %s46, 0
    %p49 = scmp.lt.s32.totalorder %s48, 0
    %s50 = scalar_select %p49, %s48, 0
    %s51 = smul.addr %s50, 8
    %s52 = scalar_lea.vmem %s0, %s51
    %s53 = sadd.s32 0, 0
    %p54 = scmp.lt.s32.totalorder %s53, 0
    %s55 = scalar_select %p54, %s53, 0
    %s56 = sadd.s32 0, 0
    %p57 = scmp.lt.s32.totalorder %s56, 0
    %s58 = scalar_select %p57, %s56, 0
    %p59 = scmp.lt.s32.totalorder %s58, 0
    %s60 = scalar_select %p59, %s58, 0
    %s61 = smul.addr %s60, 8
    %s62 = scalar_lea.vmem %s1, %s61
    %s63 = sadd.s32 0, 0
    %p64 = scmp.lt.s32.totalorder %s63, 0
    %s65 = scalar_select %p64, %s63, 0
    %p66 = scmp.eq.s32.totalorder 0, 0
    // Predicated region
    $region10: #{tpu_custom_call.1} parent=1 // pred_check
      %p67 = pneg %p66
    $region11: #{tpu_custom_call.1} parent=1 // pred_check_branch
      %69 = sbr.rel (%p67) target = $region13
    $region12: #{tpu_custom_call.1} parent=1 // pred_region
      %70 = vst [vmem:[#allocation2] sm:$0xff] 0.0
    $region13: #{tpu_custom_call.1} parent=1 // pred_fallthru
      _
    %v71 = vld [vmem:[%s52] sm:$0xff]
    %v72 = vld [vmem:[%s62] sm:$0xff]
    %vm73 = vcmask 261120
    %v74 = vsel %vm73, %v71, -inf
    %75 = vmax.xlane.f32.xlu0 %v74
    %v76 = vpop.xlane.xlu0 %75
    %v77 = vsub.f32 %v71, %v76
    %v78 = vlaneseq
    %v79 = vand.u32 %v78, 127
    %80 = vset.pattern.permute.xlu0 0
    %81 = vperm.xlu0 %80, %v72
    %v82 = vpop.permute.xlu0 %81
    %vm83 = vcmp.eq.s32.totalorder %v79, %v82
    %v84 = vsel %vm83, %v77, 0.0
    %v85 = vmul.f32 %v77, 1.442695
    %v86 = vpow.pop %v85
    %v87 = vsel %vm73, %v86, 0.0
    %88 = vadd.xlane.f32.xlu0 %v87
    %v89 = vpop.xlane.xlu0 %88
    %v90 = vsel %vm73, %v84, 0.0
    %91 = vadd.xlane.f32.xlu0 %v90
    %v92 = vpop.xlane.xlu0 %91
    %v93 = vlog2.pop %v89
    %v94 = vmul.f32 %v93, 0.6931472
    %v95 = vsub.f32 %v94, %v92
    %s96 = sadd.s32 0, 0
    %s97 = smul.u32 %s96, 8
    %v98 = vlaneseq
    %v99 = vshrl.u32 %v98, 7
    %v100 = vstv %s97
    %v101 = vadd.s32 %v100, %v99
    %vm102 = vcmp.lt.s32.totalorder %v101, 8
    %v103 = vsel %vm102, %v95, 0.0
    %v104 = vld [vmem:[#allocation2] sm:$0xff]
    %vm105 = vcmask 7168
    %v106 = vsel %vm105, %v103, 0.0
    %107 = vadd.xlane.f32.xlu0 %v106
    %v108 = vpop.xlane.xlu0 %107
    %v109 = vrot.slane %v108, 4
    %v110 = vadd.f32 %v108, %v109
    %v111 = vrot.slane %v110, 2
    %v112 = vadd.f32 %v110, %v111
    %v113 = vrot.slane %v112, 1
    %v114 = vadd.f32 %v112, %v113
    %s115 = vtos %v114
    %v116 = vstv %s115
    %v117 = vadd.f32 %v104, %v116
    %118 = vst [vmem:[#allocation2] sm:$0xff] %v117
    // Predicated region
    $region14: #{tpu_custom_call.1} parent=1 // pred_check
      _
    $region15: #{tpu_custom_call.1} parent=1 // pred_check_branch
      %120 = sbr.rel (0) target = $region17
    $region16: #{tpu_custom_call.1} parent=1 // pred_region
      %s122 = ssub.s32 128, 128
      %123 = vsyncadd [#allocation3], %s122
      %s125 = sshll.u32 [#allocation2], 4
      %s126 = int_to_ptr.vmem [resolvable:$true] %s125
      %128 = dma.vmem_to_hbm [thread:$0]  %s126, 128, %s2, [#allocation3]
    $region17: #{tpu_custom_call.1} parent=1 // pred_fallthru
      _
    // Predicated region
    $region18: #{tpu_custom_call.1} parent=1 // pred_check
      _
    $region19: #{tpu_custom_call.1} parent=1 // pred_check_branch
      %130 = sbr.rel (0) target = $region21
    $region20: #{tpu_custom_call.1} parent=1 // pred_region
      %131 = dma.done [#allocation3], 128
    $region21: #{tpu_custom_call.1} parent=1 // pred_fallthru
      _
    %132 = vsyncpa [#allocation3], 1

</llo_original>
